<compile_context>
chip_gen: v7x
topology: tpu7x:2x2x1
jax: 0.10.0
libtpu: 0.0.40
codegen_flags: <defaults>
</compile_context>

<pallas_src>
from functools import partial

import numpy as np

import jax
import jax.numpy as jnp
from jax.experimental import pallas as pl
from jax.experimental.pallas import tpu as pltpu

IGNORE_LABEL = -1
THRESH = 0.7
MIN_KEPT = 100000  # module default (max(1, min_kept))


# --------------------------------------------------------------------------- #
# Pallas kernel: per-pixel CE loss + target-prob, pixels on lanes, classes on
# sublanes.  Invalid (ignored / padded) pixels are encoded as loss=0, pred=+inf
# so the downstream glue never needs to re-read the target.
# --------------------------------------------------------------------------- #
def _ce_loss_kernel(logits_ref, tgt_ref, loss_ref, pred_ref, *, ignore_label):
    x = logits_ref[...].astype(jnp.float32)                  # (1, C, TL)
    t = tgt_ref[...]                                         # (1, 1, TL) int32
    valid = t != ignore_label
    tc = jnp.where(valid, t, 0)                              # clamp ignored -> class 0

    m = jnp.max(x, axis=1, keepdims=True)                    # (1, 1, TL) sublane reduce
    ex = jnp.exp(x - m)                                      # EUP
    lse = m + jnp.log(jnp.sum(ex, axis=1, keepdims=True))    # logsumexp over classes

    cls = jax.lax.broadcasted_iota(jnp.int32, x.shape, 1)    # class index per sublane
    xt = jnp.sum(jnp.where(cls == tc, x, 0.0), axis=1, keepdims=True)  # x[target]

    loss = lse - xt                                          # per-pixel CE
    pred = jnp.exp(xt - lse)                                 # softmax prob at target

    loss_ref[...] = jnp.where(valid, loss, 0.0)
    pred_ref[...] = jnp.where(valid, pred, jnp.inf)


def _pick_lane_tile(hw, c, itemsize, vmem_budget_bytes=12 * 1024 * 1024):
    """Largest lane tile (multiple of 128, <=8192) fitting the double-buffered blocks."""
    # 2x buffers: logits + int32 target in, f32 loss + f32 pred out.
    bytes_per_lane = 2 * (c * itemsize + 4 + 4 + 4)
    cap = max(128, (vmem_budget_bytes // bytes_per_lane) // 128 * 128)
    cap = min(cap, 8192)
    hw_ceil = -(-hw // 128) * 128
    return int(min(cap, hw_ceil))


def _per_pixel_ce(logits_nc_hw, tgt_n1_hw, *, ignore_label, tl):
    N, C, HWp = logits_nc_hw.shape
    grid = (N, HWp // tl)
    kernel = partial(_ce_loss_kernel, ignore_label=ignore_label)
    return pl.pallas_call(
        kernel,
        out_shape=(
            jax.ShapeDtypeStruct((N, 1, HWp), jnp.float32),   # loss
            jax.ShapeDtypeStruct((N, 1, HWp), jnp.float32),   # pred (target prob)
        ),
        grid_spec=pltpu.PrefetchScalarGridSpec(
            num_scalar_prefetch=0,
            grid=grid,
            in_specs=[
                pl.BlockSpec((1, C, tl), lambda n, j: (n, 0, j)),
                pl.BlockSpec((1, 1, tl), lambda n, j: (n, 0, j)),
            ],
            out_specs=[
                pl.BlockSpec((1, 1, tl), lambda n, j: (n, 0, j)),
                pl.BlockSpec((1, 1, tl), lambda n, j: (n, 0, j)),
            ],
        ),
        compiler_params=pltpu.CompilerParams(
            dimension_semantics=("parallel", "parallel"),
            vmem_limit_bytes=32 * 1024 * 1024,
        ),
    )(logits_nc_hw, tgt_n1_hw)


# --------------------------------------------------------------------------- #
# Full forward (single-tensor OHEM path of OhemCrossEntropyLoss.forward)
# --------------------------------------------------------------------------- #
def ohem_cross_entropy_loss(
    logits_nchw,
    target_nhw,
    *,
    thresh=THRESH,
    min_kept=MIN_KEPT,
    ignore_label=IGNORE_LABEL,
    tl=None,
):
    min_kept = max(1, int(min_kept))                   # matches module __init__
    N, C, H, W = logits_nchw.shape
    HW = H * W
    x = logits_nchw.reshape(N, C, HW)                  # free reshape, no relayout/upcast
    t = target_nhw.reshape(N, 1, HW).astype(jnp.int32)

    if tl is None:
        tl = _pick_lane_tile(HW, C, jnp.dtype(x.dtype).itemsize)
    HW_pad = -(-HW // tl) * tl
    if HW_pad != HW:
        x = jnp.pad(x, ((0, 0), (0, 0), (0, HW_pad - HW)))
        t = jnp.pad(t, ((0, 0), (0, 0), (0, HW_pad - HW)), constant_values=ignore_label)

    loss3, pred3 = _per_pixel_ce(x, t, ignore_label=ignore_label, tl=tl)

    # ------------- tiny O(P) glue on two f32 arrays (XLA fuses this) ------------- #
    loss = loss3.reshape(-1)                           # 0 at ignored/padded pixels
    pred = pred3.reshape(-1)                           # +inf at ignored/padded pixels
    P = loss.shape[0]

    num_valid = jnp.sum(pred < jnp.inf).astype(jnp.int32)

    # k-th smallest valid pred via top_k selection (no full O(P log P) sort).
    k_static = int(min(min_kept + 1, P))
    smallest = -jax.lax.top_k(-pred, k_static)[0]      # ascending; +inf sinks to the end
    kk = jnp.clip(jnp.minimum(jnp.int32(min_kept), num_valid - 1), 0, k_static - 1)
    min_value = jnp.take(smallest, kk)
    threshold = jnp.maximum(min_value, jnp.float32(thresh))

    keep = pred < threshold                            # strict '<'; invalid (=inf) never kept
    cnt = jnp.sum(keep).astype(jnp.float32)
    total = jnp.sum(jnp.where(keep, loss, 0.0))
    # empty selection -> NaN (matches torch .mean() over an empty tensor), without 0/0
    return jnp.where(cnt > 0, total / jnp.maximum(cnt, 1.0), jnp.nan)


# --------------------------------------------------------------------------- #
# Pure-JAX reference (mirrors the PyTorch semantics) for a sanity check
# --------------------------------------------------------------------------- #
def _reference(logits_nchw, target_nhw, thresh, min_kept, ignore_label):
    N, C, H, W = logits_nchw.shape
    x = jnp.transpose(logits_nchw, (0, 2, 3, 1)).reshape(-1, C).astype(jnp.float32)
    t = target_nhw.reshape(-1).astype(jnp.int32)
    valid = t != ignore_label
    tc = jnp.where(valid, t, 0)
    lse = jax.scipy.special.logsumexp(x, axis=-1)
    xt = jnp.take_along_axis(x, tc[:, None], axis=-1)[:, 0]
    loss = lse - xt
    pred = jnp.exp(xt - lse)
    num_valid = jnp.sum(valid)
    sp = jnp.sort(jnp.where(valid, pred, jnp.inf))
    k = jnp.minimum(min_kept, num_valid - 1)
    min_value = jnp.take(sp, k)
    thr = jnp.maximum(min_value, jnp.float32(thresh))
    keep = valid & (pred < thr)
    return jnp.sum(jnp.where(keep, loss, 0.0)) / jnp.sum(keep)


if __name__ == "__main__":
    key = jax.random.PRNGKey(0)
    k1, k2 = jax.random.split(key)

    N, C, H, W = 2, 4, 16, 16
    logits = jax.random.normal(k1, (N, C, H, W), dtype=jnp.float32) * 2.0
    # labels in [-1, C): -1 is the ignore label
    target = jax.random.randint(k2, (N, H, W), -1, C, dtype=jnp.int32)

    out = ohem_cross_entropy_loss(logits, target)
    out = jax.block_until_ready(out)

    ref = jax.block_until_ready(_reference(logits, target, THRESH, MIN_KEPT, IGNORE_LABEL))

    assert np.isfinite(float(out)), "loss is not finite"
    assert np.allclose(float(out), float(ref), rtol=1e-3, atol=1e-4), (float(out), float(ref))
    print("KERNEL_OK")
</pallas_src>

<mosaic_0001>
module attributes {stable_mosaic.version = 11 : i64} {
  func.func @_ce_loss_kernel(%arg0: i32, %arg1: i32, %arg2: memref<1x4x256xf32, #tpu.memory_space<vmem>>, %arg3: memref<1x1x256xi32, #tpu.memory_space<vmem>>, %arg4: memref<1x1x256xf32, #tpu.memory_space<vmem>>, %arg5: memref<1x1x256xf32, #tpu.memory_space<vmem>>) attributes {dimension_semantics = [#tpu.dimension_semantics<parallel>, #tpu.dimension_semantics<parallel>], iteration_bounds = array<i64: 2, 1>, scalar_prefetch = 0 : i64, scratch_operands = 0 : i64, tpu.core_type = #tpu.core_type<tc>, window_params = [{transform_indices = @transform_0, window_bounds = array<i64: 1, 4, 256>}, {transform_indices = @transform_1, window_bounds = array<i64: 1, 1, 256>}, {transform_indices = @transform_2, window_bounds = array<i64: 1, 1, 256>}, {transform_indices = @transform_3, window_bounds = array<i64: 1, 1, 256>}]} {
    %c0 = arith.constant 0 : index
    %c0_0 = arith.constant 0 : index
    %c0_1 = arith.constant 0 : index
    %0 = vector.load %arg2[%c0, %c0_0, %c0_1] : memref<1x4x256xf32, #tpu.memory_space<vmem>>, vector<1x4x256xf32>
    %c0_2 = arith.constant 0 : index
    %c0_3 = arith.constant 0 : index
    %c0_4 = arith.constant 0 : index
    %1 = vector.load %arg3[%c0_2, %c0_3, %c0_4] : memref<1x1x256xi32, #tpu.memory_space<vmem>>, vector<1x1x256xi32>
    %c-1_i32 = arith.constant -1 : i32
    %2 = vector.broadcast %c-1_i32 : i32 to vector<1x1x256xi32>
    %3 = arith.cmpi ne, %1, %2 : vector<1x1x256xi32>
    %c0_i32 = arith.constant 0 : i32
    %4 = vector.broadcast %c0_i32 : i32 to vector<1x1x256xi32>
    %5 = arith.select %3, %1, %4 : vector<1x1x256xi1>, vector<1x1x256xi32>
    %cst = arith.constant dense<0xFF800000> : vector<1x256xf32>
    %6 = vector.multi_reduction <maximumf>, %0, %cst [1] : vector<1x4x256xf32> to vector<1x256xf32>
    %7 = vector.shape_cast %6 : vector<1x256xf32> to vector<1x1x256xf32>
    %8 = vector.broadcast %7 : vector<1x1x256xf32> to vector<1x4x256xf32>
    %9 = arith.subf %0, %8 : vector<1x4x256xf32>
    %10 = math.exp %9 : vector<1x4x256xf32>
    %cst_5 = arith.constant dense<0.000000e+00> : vector<1x256xf32>
    %11 = vector.multi_reduction <add>, %10, %cst_5 [1] : vector<1x4x256xf32> to vector<1x256xf32>
    %12 = vector.shape_cast %11 : vector<1x256xf32> to vector<1x1x256xf32>
    %13 = math.log %12 : vector<1x1x256xf32>
    %14 = arith.addf %7, %13 : vector<1x1x256xf32>
    %15 = tpu.iota {dimensions = array<i32: 1>} : vector<1x4x256xi32>
    %16 = vector.broadcast %5 : vector<1x1x256xi32> to vector<1x4x256xi32>
    %17 = arith.cmpi eq, %15, %16 : vector<1x4x256xi32>
    %cst_6 = arith.constant 0.000000e+00 : f32
    %18 = vector.broadcast %cst_6 : f32 to vector<1x4x256xf32>
    %19 = arith.select %17, %0, %18 : vector<1x4x256xi1>, vector<1x4x256xf32>
    %cst_7 = arith.constant dense<0.000000e+00> : vector<1x256xf32>
    %20 = vector.multi_reduction <add>, %19, %cst_7 [1] : vector<1x4x256xf32> to vector<1x256xf32>
    %21 = vector.shape_cast %20 : vector<1x256xf32> to vector<1x1x256xf32>
    %22 = arith.subf %14, %21 : vector<1x1x256xf32>
    %23 = arith.subf %21, %14 : vector<1x1x256xf32>
    %24 = math.exp %23 : vector<1x1x256xf32>
    %cst_8 = arith.constant 0.000000e+00 : f32
    %25 = vector.broadcast %cst_8 : f32 to vector<1x1x256xf32>
    %26 = arith.select %3, %22, %25 : vector<1x1x256xi1>, vector<1x1x256xf32>
    %c0_9 = arith.constant 0 : index
    %c0_10 = arith.constant 0 : index
    %c0_11 = arith.constant 0 : index
    %27 = vector.load %arg4[%c0_9, %c0_10, %c0_11] : memref<1x1x256xf32, #tpu.memory_space<vmem>>, vector<1x1x256xf32>
    tpu.vector_store %arg4[%c0_9, %c0_10, %c0_11], %26 {strides = array<i32>} : memref<1x1x256xf32, #tpu.memory_space<vmem>>, vector<1x1x256xf32>,
    %cst_12 = arith.constant 0x7F800000 : f32
    %28 = vector.broadcast %cst_12 : f32 to vector<1x1x256xf32>
    %29 = arith.select %3, %24, %28 : vector<1x1x256xi1>, vector<1x1x256xf32>
    %c0_13 = arith.constant 0 : index
    %c0_14 = arith.constant 0 : index
    %c0_15 = arith.constant 0 : index
    %30 = vector.load %arg5[%c0_13, %c0_14, %c0_15] : memref<1x1x256xf32, #tpu.memory_space<vmem>>, vector<1x1x256xf32>
    tpu.vector_store %arg5[%c0_13, %c0_14, %c0_15], %29 {strides = array<i32>} : memref<1x1x256xf32, #tpu.memory_space<vmem>>, vector<1x1x256xf32>,
    return
  }
  func.func @transform_0(%arg0: i32, %arg1: i32) -> (i32, i32, i32) {
    %c0_i32 = arith.constant 0 : i32
    %c0_i32_0 = arith.constant 0 : i32
    return %arg0, %c0_i32, %arg1 : i32, i32, i32
  }
  func.func @transform_1(%arg0: i32, %arg1: i32) -> (i32, i32, i32) {
    %c0_i32 = arith.constant 0 : i32
    %c0_i32_0 = arith.constant 0 : i32
    return %arg0, %c0_i32, %arg1 : i32, i32, i32
  }
  func.func @transform_2(%arg0: i32, %arg1: i32) -> (i32, i32, i32) {
    %c0_i32 = arith.constant 0 : i32
    %c0_i32_0 = arith.constant 0 : i32
    return %arg0, %c0_i32, %arg1 : i32, i32, i32
  }
  func.func @transform_3(%arg0: i32, %arg1: i32) -> (i32, i32, i32) {
    %c0_i32 = arith.constant 0 : i32
    %c0_i32_0 = arith.constant 0 : i32
    return %arg0, %c0_i32, %arg1 : i32, i32, i32
  }
}

</mosaic_0001>

<llo_original>
// kernel: tpu_custom_call.1
$region0: #{tpu_custom_call.1}
  #allocation0 [shape = 'u32[]', space=smem, size = 0x4, offset = 0x4, fixed_abs, tag = 'smem constant byte address 0x4 - core index']
  #allocation1 [shape = 'u32[144,128]{1,0:T(1,128)}', space=vmem, size = 0x12000, scoped, tag = 'internal scratch']
  %s0 = inlined_call_operand.hbm [shape: f32[2,4,256], index: 0, kind: input, shape index: {}]
  %s1 = inlined_call_operand.hbm [shape: s32[2,1,256], index: 1, kind: input, shape index: {}]
  %s2 = inlined_call_operand.hbm [shape: f32[2,1,256], index: 2, kind: output, shape index: {0}]
  %s3 = inlined_call_operand.hbm [shape: f32[2,1,256], index: 3, kind: output, shape index: {1}]
  %4 = xla_tuple %s2, %s3
  %s5 = sld [smem:[#allocation0]]
  $region57: #{tpu_custom_call.1} parent=0
    _
  %s7 = ssub.s32 1, %s5
  %s8 = scalar_select 0, %s7, %s5
  $region1: #{tpu_custom_call.1} parent=0
    #allocation2 [shape = 'u8[8192]{0}', space=vmem, size = 0x2000, scoped, tag = 'input window, operand 0']
    #allocation3 [shape = 's32[2]{0}', space=sflag, size = 0x8, scoped, tag = 'scoped memory for tpu_custom_call.1']
    #allocation4 [shape = 's32[2]{0}', space=sflag, size = 0x8, scoped, tag = 'scoped memory for tpu_custom_call.1']
    #allocation5 [shape = 'u8[2048]{0}', space=vmem, size = 0x800, scoped, tag = 'input window, operand 1']
    #allocation6 [shape = 's32[2]{0}', space=sflag, size = 0x8, scoped, tag = 'scoped memory for tpu_custom_call.1']
    #allocation7 [shape = 'u8[2048]{0}', space=vmem, size = 0x800, scoped, tag = 'output window, operand 0']
    #allocation8 [shape = 'u8[2048]{0}', space=vmem, size = 0x800, scoped, tag = 'output window, operand 1']
    #allocation9 [shape = 's32[2]{0}', space=sflag, size = 0x8, scoped, tag = 'scoped memory for tpu_custom_call.1']
    %9 = vsyncpa [#allocation3], 0
    %s10 = scalar_lea.sflag [#allocation3], 1
    %11 = vsyncpa %s10, 0
    %12 = vsyncpa [#allocation6], 0
    %s13 = scalar_lea.sflag [#allocation6], 1
    %14 = vsyncpa %s13, 0
    %15 = vsyncpa [#allocation4], 0
    %s16 = scalar_lea.sflag [#allocation4], 1
    %17 = vsyncpa %s16, 0
    %18 = vsyncpa [#allocation9], 0
    %s19 = scalar_lea.sflag [#allocation9], 1
    %20 = vsyncpa %s19, 0
    loop: start=0, step=1, limit=4
    $region2: #{tpu_custom_call.1} parent=1 // loop_pre_header
      _
    $region3: #{tpu_custom_call.1} parent=1 // loop_header
      %s22 = sphi 0, %s26
      %p23 = scmp.ge.s32.totalorder %s22, 4
      %s29 = sphi 0, %s41
      %s30 = sphi 0, %s37
      %s31 = sphi 0, %s29
      %s32 = sphi 0, %s30
      %s33 = sphi 0, %s31
      %s34 = sphi 0, %s32
      %s46 = sphi 0, %s48
      %s49 = sphi 0, %s46
      %s50 = sphi 0, %s49
      %s66 = sphi 0, %s50
      %s74 = sphi 0, %s76
      %s77 = sphi 0, %s74
      %s78 = sphi 0, %s77
      %s94 = sphi 0, %s78
      %s102 = sphi 0, %s104
      %s105 = sphi 0, %s102
      %s106 = sphi 0, %s105
      %s122 = sphi 0, %s106
      %s130 = sphi 0, %s132
      %s133 = sphi 0, %s130
      %s134 = sphi 0, %s133
      %s150 = sphi 0, %s134
    $region4: #{tpu_custom_call.1} parent=1 // loop_header_branch
      %25 = sbr.rel (%p23) target = $region8
    $region5: #{tpu_custom_call.1} parent=1 // loop_body
      %s27 = ssub.s32 %s22, 1
      %s28 = ssub.s32 %s22, 2
      %s35 = sadd.s32 1, %s30
      %p36 = scmp.ge.s32.totalorder %s35, 1
      %s37 = scalar_select %p36, 0, %s35
      %s38 = sadd.s32 1, %s29
      %s39 = scalar_select %p36, %s38, %s29
      %p40 = scmp.ge.s32.totalorder %s39, 2
      %s41 = scalar_select %p40, 0, %s39
      %s42 = ssub.s32 %s29, %s41
      %s43 = ssub.s32 %s30, %s37
      %s44 = sor.u32 %s42, %s43
      %p45 = scmp.eq.s32.totalorder %s44, 0
      %s47 = sadd.s32 %s46, 1
      %s48 = scalar_select %p45, %s46, %s47
      %p51 = pneg %p45
      %p52 = scmp.eq.s32.totalorder %s22, 1
      %p53 = por %p51, %p52
      %p54 = scmp.ne.s32.totalorder %s46, %s49
      %p55 = scmp.eq.s32.totalorder %s22, 0
      %p56 = por %p54, %p55
      %p57 = scmp.ne.s32.totalorder %s46, %s49
      %p58 = scmp.eq.s32.totalorder %s27, 1
      %p59 = por %p57, %p58
      %p60 = scmp.ne.s32.totalorder %s49, %s50
      %p61 = scmp.eq.s32.totalorder %s27, 0
      %p62 = por %p60, %p61
      %p63 = scmp.ne.s32.totalorder %s49, %s50
      %p64 = scmp.eq.s32.totalorder %s28, 1
      %p65 = por %p63, %p64
      %p67 = scmp.ne.s32.totalorder %s50, %s66
      %p68 = scmp.eq.s32.totalorder %s28, 0
      %p69 = por %p67, %p68
      %s70 = ssub.s32 %s29, %s41
      %s71 = ssub.s32 %s30, %s37
      %s72 = sor.u32 %s70, %s71
      %p73 = scmp.eq.s32.totalorder %s72, 0
      %s75 = sadd.s32 %s74, 1
      %s76 = scalar_select %p73, %s74, %s75
      %p79 = pneg %p73
      %p80 = scmp.eq.s32.totalorder %s22, 1
      %p81 = por %p79, %p80
      %p82 = scmp.ne.s32.totalorder %s74, %s77
      %p83 = scmp.eq.s32.totalorder %s22, 0
      %p84 = por %p82, %p83
      %p85 = scmp.ne.s32.totalorder %s74, %s77
      %p86 = scmp.eq.s32.totalorder %s27, 1
      %p87 = por %p85, %p86
      %p88 = scmp.ne.s32.totalorder %s77, %s78
      %p89 = scmp.eq.s32.totalorder %s27, 0
      %p90 = por %p88, %p89
      %p91 = scmp.ne.s32.totalorder %s77, %s78
      %p92 = scmp.eq.s32.totalorder %s28, 1
      %p93 = por %p91, %p92
      %p95 = scmp.ne.s32.totalorder %s78, %s94
      %p96 = scmp.eq.s32.totalorder %s28, 0
      %p97 = por %p95, %p96
      %s98 = ssub.s32 %s29, %s41
      %s99 = ssub.s32 %s30, %s37
      %s100 = sor.u32 %s98, %s99
      %p101 = scmp.eq.s32.totalorder %s100, 0
      %s103 = sadd.s32 %s102, 1
      %s104 = scalar_select %p101, %s102, %s103
      %p107 = pneg %p101
      %p108 = scmp.eq.s32.totalorder %s22, 1
      %p109 = por %p107, %p108
      %p110 = scmp.ne.s32.totalorder %s102, %s105
      %p111 = scmp.eq.s32.totalorder %s22, 0
      %p112 = por %p110, %p111
      %p113 = scmp.ne.s32.totalorder %s102, %s105
      %p114 = scmp.eq.s32.totalorder %s27, 1
      %p115 = por %p113, %p114
      %p116 = scmp.ne.s32.totalorder %s105, %s106
      %p117 = scmp.eq.s32.totalorder %s27, 0
      %p118 = por %p116, %p117
      %p119 = scmp.ne.s32.totalorder %s105, %s106
      %p120 = scmp.eq.s32.totalorder %s28, 1
      %p121 = por %p119, %p120
      %p123 = scmp.ne.s32.totalorder %s106, %s122
      %p124 = scmp.eq.s32.totalorder %s28, 0
      %p125 = por %p123, %p124
      %s126 = ssub.s32 %s29, %s41
      %s127 = ssub.s32 %s30, %s37
      %s128 = sor.u32 %s126, %s127
      %p129 = scmp.eq.s32.totalorder %s128, 0
      %s131 = sadd.s32 %s130, 1
      %s132 = scalar_select %p129, %s130, %s131
      %p135 = pneg %p129
      %p136 = scmp.eq.s32.totalorder %s22, 1
      %p137 = por %p135, %p136
      %p138 = scmp.ne.s32.totalorder %s130, %s133
      %p139 = scmp.eq.s32.totalorder %s22, 0
      %p140 = por %p138, %p139
      %p141 = scmp.ne.s32.totalorder %s130, %s133
      %p142 = scmp.eq.s32.totalorder %s27, 1
      %p143 = por %p141, %p142
      %p144 = scmp.ne.s32.totalorder %s133, %s134
      %p145 = scmp.eq.s32.totalorder %s27, 0
      %p146 = por %p144, %p145
      %p147 = scmp.ne.s32.totalorder %s133, %s134
      %p148 = scmp.eq.s32.totalorder %s28, 1
      %p149 = por %p147, %p148
      %p151 = scmp.ne.s32.totalorder %s134, %s150
      %p152 = scmp.eq.s32.totalorder %s28, 0
      %p153 = por %p151, %p152
      %p154 = scmp.le.s32.totalorder 1, %s22
      %p155 = scmp.lt.s32.totalorder %s22, 3
      %p156 = pnand %p154, %p155
      %p157 = pneg %p156
      // Predicated region
      $region9: #{tpu_custom_call.1} parent=5 // pred_check
        _
      $region10: #{tpu_custom_call.1} parent=5 // pred_check_branch
        %159 = sbr.rel (%p156) target = $region12
      $region11: #{tpu_custom_call.1} parent=5 // pred_region
        %s160 = ssub.s32 %s22, 1
      $region12: #{tpu_custom_call.1} parent=5 // pred_fallthru
        _
      %p161 = scmp.lt.s32.totalorder %s22, 2
      // Predicated region
      $region13: #{tpu_custom_call.1} parent=5 // pred_check
        %p162 = pneg %p161
      $region14: #{tpu_custom_call.1} parent=5 // pred_check_branch
        %164 = sbr.rel (%p162) target = $region16
      $region15: #{tpu_custom_call.1} parent=5 // pred_region
        // Predicated region
        $region17: #{tpu_custom_call.1} parent=15 // pred_check
          %p165 = pneg %p56
        $region18: #{tpu_custom_call.1} parent=15 // pred_check_branch
          %167 = sbr.rel (%p165) target = $region20
        $region19: #{tpu_custom_call.1} parent=15 // pred_region
          %s168 = sand.u32 %s46, 1
          %s169 = scalar_lea.sflag [#allocation3], %s168
          %s170 = sand.u32 %s46, 1
          %s171 = smul.addr %s170, 8
          %s172 = scalar_lea.vmem [#allocation2], %s171
          %s173 = smul.u32 2, %s30
          %s175 = ssub.s32 128, 128
          %176 = vsyncadd %s169, %s175
          %s177 = smul.addr %s29, 2
          %s178 = sadd.s32 %s173, %s177
          %s179 = smul.addr %s178, 64
          %s180 = scalar_lea.hbm %s0, %s179
          %s182 = sshll.u32 %s172, 4
          %s183 = int_to_ptr.vmem [resolvable:$true] %s182
          %185 = dma.hbm_to_vmem [thread:$0]  %s180, 128, %s183, %s169
        $region20: #{tpu_custom_call.1} parent=15 // pred_fallthru
          _
        // Predicated region
        $region21: #{tpu_custom_call.1} parent=15 // pred_check
          %p186 = pneg %p84
        $region22: #{tpu_custom_call.1} parent=15 // pred_check_branch
          %188 = sbr.rel (%p186) target = $region24
        $region23: #{tpu_custom_call.1} parent=15 // pred_region
          %s189 = sand.u32 %s74, 1
          %s190 = scalar_lea.sflag [#allocation6], %s189
          %s191 = sand.u32 %s74, 1
          %s192 = smul.addr %s191, 2
          %s193 = scalar_lea.vmem [#allocation5], %s192
          %s194 = smul.u32 2, %s30
          %s196 = ssub.s32 32, 32
          %197 = vsyncadd %s190, %s196
          %s198 = smul.addr %s29, 2
          %s199 = sadd.s32 %s194, %s198
          %s200 = smul.addr %s199, 16
          %s201 = scalar_lea.hbm %s1, %s200
          %s203 = sshll.u32 %s193, 4
          %s204 = int_to_ptr.vmem [resolvable:$true] %s203
          %206 = dma.hbm_to_vmem [thread:$0]  %s201, 32, %s204, %s190
        $region24: #{tpu_custom_call.1} parent=15 // pred_fallthru
          _
      $region16: #{tpu_custom_call.1} parent=5 // pred_fallthru
        _
      %p207 = scmp.le.s32.totalorder 1, %s22
      %p208 = scmp.lt.s32.totalorder %s22, 3
      %p209 = pnand %p207, %p208
      %p210 = pneg %p209
      // Predicated region
      $region25: #{tpu_custom_call.1} parent=5 // pred_check
        _
      $region26: #{tpu_custom_call.1} parent=5 // pred_check_branch
        %212 = sbr.rel (%p209) target = $region28
      $region27: #{tpu_custom_call.1} parent=5 // pred_region
        %s213 = ssub.s32 %s22, 1
        %s214 = sand.u32 %s49, 1
        %s215 = scalar_lea.sflag [#allocation3], %s214
        %s216 = sand.u32 %s49, 1
        %s217 = smul.addr %s216, 8
        %s218 = scalar_lea.vmem [#allocation2], %s217
        // Predicated region
        $region29: #{tpu_custom_call.1} parent=27 // pred_check
          %p219 = pneg %p62
        $region30: #{tpu_custom_call.1} parent=27 // pred_check_branch
          %221 = sbr.rel (%p219) target = $region32
        $region31: #{tpu_custom_call.1} parent=27 // pred_region
          %222 = dma.done %s215, 128
        $region32: #{tpu_custom_call.1} parent=27 // pred_fallthru
          _
        %s223 = sand.u32 %s77, 1
        %s224 = scalar_lea.sflag [#allocation6], %s223
        %s225 = sand.u32 %s77, 1
        %s226 = smul.addr %s225, 2
        %s227 = scalar_lea.vmem [#allocation5], %s226
        // Predicated region
        $region33: #{tpu_custom_call.1} parent=27 // pred_check
          %p228 = pneg %p90
        $region34: #{tpu_custom_call.1} parent=27 // pred_check_branch
          %230 = sbr.rel (%p228) target = $region36
        $region35: #{tpu_custom_call.1} parent=27 // pred_region
          %231 = dma.done %s224, 32
        $region36: #{tpu_custom_call.1} parent=27 // pred_fallthru
          _
        %s232 = sand.u32 %s49, 1
        %s233 = scalar_lea.sflag [#allocation3], %s232
        %s234 = sand.u32 %s49, 1
        %s235 = smul.addr %s234, 8
        %s236 = scalar_lea.vmem [#allocation2], %s235
        %p237 = pneg %p62
        %p238 = pneg %p59
        %s239 = sand.u32 %s77, 1
        %s240 = scalar_lea.sflag [#allocation6], %s239
        %s241 = sand.u32 %s77, 1
        %s242 = smul.addr %s241, 2
        %s243 = scalar_lea.vmem [#allocation5], %s242
        %p244 = pneg %p90
        %p245 = pneg %p87
        %p246 = pneg %p118
        %p247 = pneg %p115
        %s248 = sand.u32 %s105, 1
        %s249 = scalar_lea.sflag [#allocation4], %s248
        %s250 = sand.u32 %s105, 1
        %s251 = smul.addr %s250, 2
        %s252 = scalar_lea.vmem [#allocation7], %s251
        %p253 = pneg %p146
        %p254 = pneg %p143
        %s255 = sand.u32 %s133, 1
        %s256 = scalar_lea.sflag [#allocation9], %s255
        %s257 = sand.u32 %s133, 1
        %s258 = smul.addr %s257, 2
        %s259 = scalar_lea.vmem [#allocation8], %s258
        %s260 = smul.u32 2, %s32
        %s261 = smul.u32 2, %s32
        %s262 = smul.u32 2, %s32
        %s263 = smul.u32 2, %s32
        %v264 = vld [vmem:[%s218] sm:$0xff]
        %v265 = vld [vmem:[%s227] sm:$0x3]
        %vm266 = vcmp.ne.s32.totalorder %v265, 4294967295
        %v267 = vsel %vm266, %v265, 0
        %v269 = vcombine.high %v264, %v264
        %vm271 = vcmask 1043456
        %v272 = vsel %vm271, %v264, -inf
        %v273 = vrot.slane %v272, 4
        %v274 = vmax.f32 %v272, %v273
        %v275 = vrot.slane %v274, 2
        %v276 = vmax.f32 %v274, %v275
        %v277 = vrot.slane %v276, 1
        %v278 = vmax.f32 %v276, %v277
        %v279 = vsel %vm271, %v269, -inf
        %v280 = vrot.slane %v279, 4
        %v281 = vmax.f32 %v279, %v280
        %v282 = vrot.slane %v281, 2
        %v283 = vmax.f32 %v281, %v282
        %v284 = vrot.slane %v283, 1
        %v285 = vmax.f32 %v283, %v284
        %v288 = vcombine.low %v278, %v285
        %v290 = vsub.f32 %v264, %v288
        %v291 = vmul.f32 %v290, 1.442695
        %v292 = vpow.pop %v291
        %v294 = vcombine.high %v292, %v292
        %v296 = vsel %vm271, %v292, 0.0
        %v297 = vrot.slane %v296, 4
        %v298 = vadd.f32 %v296, %v297
        %v299 = vrot.slane %v298, 2
        %v300 = vadd.f32 %v298, %v299
        %v301 = vrot.slane %v300, 1
        %v302 = vadd.f32 %v300, %v301
        %v303 = vsel %vm271, %v294, 0.0
        %v304 = vrot.slane %v303, 4
        %v305 = vadd.f32 %v303, %v304
        %v306 = vrot.slane %v305, 2
        %v307 = vadd.f32 %v305, %v306
        %v308 = vrot.slane %v307, 1
        %v309 = vadd.f32 %v307, %v308
        %v310 = vlog2.pop %v302
        %v311 = vmul.f32 %v310, 0.6931472
        %v312 = vlog2.pop %v309
        %v313 = vmul.f32 %v312, 0.6931472
        %v314 = vadd.f32 %v278, %v311
        %v315 = vadd.f32 %v285, %v313
        %v316 = vlaneseq
        %v317 = vshrl.u32 %v316, 7
        %v318 = vlaneseq
        %v319 = vshrl.u32 %v318, 7
        %v320 = vsub.s32 0, %v319
        %v321 = vrot.slane %v267, %v320
        %v322 = vlaneseq
        %v323 = vshrl.u32 %v322, 7
        %v324 = vsub.s32 1, %v323
        %v325 = vrot.slane %v267, %v324
        %vm326 = vcmp.eq.s32.totalorder %v317, %v321
        %vm327 = vcmp.eq.s32.totalorder %v317, %v325
        %v328 = vsel %vm326, %v264, 0.0
        %v329 = vsel %vm327, %v269, 0.0
        %v330 = vsel %vm271, %v328, 0.0
        %v331 = vrot.slane %v330, 4
        %v332 = vadd.f32 %v330, %v331
        %v333 = vrot.slane %v332, 2
        %v334 = vadd.f32 %v332, %v333
        %v335 = vrot.slane %v334, 1
        %v336 = vadd.f32 %v334, %v335
        %v337 = vsel %vm271, %v329, 0.0
        %v338 = vrot.slane %v337, 4
        %v339 = vadd.f32 %v337, %v338
        %v340 = vrot.slane %v339, 2
        %v341 = vadd.f32 %v339, %v340
        %v342 = vrot.slane %v341, 1
        %v343 = vadd.f32 %v341, %v342
        %v344 = vsub.f32 %v314, %v336
        %v345 = vsub.f32 %v315, %v343
        %v346 = vsub.f32 %v336, %v314
        %v347 = vsub.f32 %v343, %v315
        %v348 = vmul.f32 %v346, 1.442695
        %v349 = vpow.pop %v348
        %v350 = vmul.f32 %v347, 1.442695
        %v351 = vpow.pop %v350
        %v354 = vcombine.low %v344, %v345
        %v356 = vunpack.c.l.s4 1966171168
        %v357 = vunpack.c.0.s8 %v356
        %v358 = vlaneseq
        %v359 = vshrl.u32 %v358, 7
        %v360 = vsub.s32 %v357, %v359
        %v361 = vrot.slane %v354, %v360
        %v363 = vunpack.c.l.s4 1966171168
        %v364 = vunpack.c.0.s8 %v363
        %v365 = vlaneseq
        %v366 = vshrl.u32 %v365, 7
        %v367 = vsub.s32 %v364, %v366
        %v368 = vrot.slane %v361, %v367
        %v370 = vsel %vm266, %v368, 0.0
        %v371 = vlaneseq
        %vm372 = vcmp.ge.s32.totalorder %v371, 0
        %vm373 = vcmp.lt.s32.totalorder %v371, 256
        %vm374 = vmand %vm372, %vm373
        %375 = vst.msk [vmem:[%s252] sm:$0x3] %vm374, %v370
        %v378 = vcombine.low %v349, %v351
        %v380 = vunpack.c.l.s4 1966171168
        %v381 = vunpack.c.0.s8 %v380
        %v382 = vlaneseq
        %v383 = vshrl.u32 %v382, 7
        %v384 = vsub.s32 %v381, %v383
        %v385 = vrot.slane %v378, %v384
        %v387 = vunpack.c.l.s4 1966171168
        %v388 = vunpack.c.0.s8 %v387
        %v389 = vlaneseq
        %v390 = vshrl.u32 %v389, 7
        %v391 = vsub.s32 %v388, %v390
        %v392 = vrot.slane %v385, %v391
        %v394 = vsel %vm266, %v392, inf
        %395 = vst.msk [vmem:[%s259] sm:$0x3] %vm374, %v394
        %s396 = sand.u32 %s105, 1
        %s397 = scalar_lea.sflag [#allocation4], %s396
        %s398 = sand.u32 %s105, 1
        %s399 = smul.addr %s398, 2
        %s400 = scalar_lea.vmem [#allocation7], %s399
        %s401 = sand.u32 %s133, 1
        %s402 = scalar_lea.sflag [#allocation9], %s401
        %s403 = sand.u32 %s133, 1
        %s404 = smul.addr %s403, 2
        %s405 = scalar_lea.vmem [#allocation8], %s404
        // Predicated region
        $region37: #{tpu_custom_call.1} parent=27 // pred_check
          %p406 = pneg %p115
        $region38: #{tpu_custom_call.1} parent=27 // pred_check_branch
          %408 = sbr.rel (%p406) target = $region40
        $region39: #{tpu_custom_call.1} parent=27 // pred_region
          %s409 = smul.u32 2, %s32
          %s411 = ssub.s32 32, 32
          %412 = vsyncadd %s397, %s411
          %s413 = smul.addr %s31, 2
          %s414 = sadd.s32 %s409, %s413
          %s415 = smul.addr %s414, 16
          %s416 = scalar_lea.hbm %s2, %s415
          %s418 = sshll.u32 %s400, 4
          %s419 = int_to_ptr.vmem [resolvable:$true] %s418
          %421 = dma.vmem_to_hbm [thread:$0]  %s419, 32, %s416, %s397
        $region40: #{tpu_custom_call.1} parent=27 // pred_fallthru
          _
        // Predicated region
        $region41: #{tpu_custom_call.1} parent=27 // pred_check
          %p422 = pneg %p143
        $region42: #{tpu_custom_call.1} parent=27 // pred_check_branch
          %424 = sbr.rel (%p422) target = $region44
        $region43: #{tpu_custom_call.1} parent=27 // pred_region
          %s425 = smul.u32 2, %s32
          %s427 = ssub.s32 32, 32
          %428 = vsyncadd %s402, %s427
          %s429 = smul.addr %s31, 2
          %s430 = sadd.s32 %s425, %s429
          %s431 = smul.addr %s430, 16
          %s432 = scalar_lea.hbm %s3, %s431
          %s434 = sshll.u32 %s405, 4
          %s435 = int_to_ptr.vmem [resolvable:$true] %s434
          %437 = dma.vmem_to_hbm [thread:$0]  %s435, 32, %s432, %s402
        $region44: #{tpu_custom_call.1} parent=27 // pred_fallthru
          _
      $region28: #{tpu_custom_call.1} parent=5 // pred_fallthru
        _
      %p438 = scmp.le.s32.totalorder 2, %s22
      // Predicated region
      $region45: #{tpu_custom_call.1} parent=5 // pred_check
        %p439 = pneg %p438
      $region46: #{tpu_custom_call.1} parent=5 // pred_check_branch
        %441 = sbr.rel (%p439) target = $region48
      $region47: #{tpu_custom_call.1} parent=5 // pred_region
        %s442 = ssub.s32 %s22, 2
        // Predicated region
        $region49: #{tpu_custom_call.1} parent=47 // pred_check
          %p443 = pneg %p121
        $region50: #{tpu_custom_call.1} parent=47 // pred_check_branch
          %445 = sbr.rel (%p443) target = $region52
        $region51: #{tpu_custom_call.1} parent=47 // pred_region
          %s446 = sand.u32 %s106, 1
          %s447 = scalar_lea.sflag [#allocation4], %s446
          %s448 = sand.u32 %s106, 1
          %s449 = smul.addr %s448, 2
          %s450 = scalar_lea.vmem [#allocation7], %s449
          %451 = dma.done %s447, 32
        $region52: #{tpu_custom_call.1} parent=47 // pred_fallthru
          _
        // Predicated region
        $region53: #{tpu_custom_call.1} parent=47 // pred_check
          %p452 = pneg %p149
        $region54: #{tpu_custom_call.1} parent=47 // pred_check_branch
          %454 = sbr.rel (%p452) target = $region56
        $region55: #{tpu_custom_call.1} parent=47 // pred_region
          %s455 = sand.u32 %s134, 1
          %s456 = scalar_lea.sflag [#allocation9], %s455
          %s457 = sand.u32 %s134, 1
          %s458 = smul.addr %s457, 2
          %s459 = scalar_lea.vmem [#allocation8], %s458
          %460 = dma.done %s456, 32
        $region56: #{tpu_custom_call.1} parent=47 // pred_fallthru
          _
      $region48: #{tpu_custom_call.1} parent=5 // pred_fallthru
        _
    $region6: #{tpu_custom_call.1} parent=1 // loop_footer
      %s26 = sadd.s32 1, %s22
    $region7: #{tpu_custom_call.1} parent=1 // loop_footer_branch
      %21 = sbr.rel target = $region3
    $region8: #{tpu_custom_call.1} parent=1 // loop_exit
      _
    %461 = vsyncpa [#allocation3], 1
    %s462 = scalar_lea.sflag [#allocation3], 1
    %463 = vsyncpa %s462, 1
    %464 = vsyncpa [#allocation6], 1
    %s465 = scalar_lea.sflag [#allocation6], 1
    %466 = vsyncpa %s465, 1
    %467 = vsyncpa [#allocation4], 1
    %s468 = scalar_lea.sflag [#allocation4], 1
    %469 = vsyncpa %s468, 1
    %470 = vsyncpa [#allocation9], 1
    %s471 = scalar_lea.sflag [#allocation9], 1
    %472 = vsyncpa %s471, 1

</llo_original>
